<compile_context>
chip_gen: v6e
topology: v6e:2x2x1
jax: 0.10.0
libtpu: 0.0.40
codegen_flags: <defaults>
</compile_context>

<pallas_src>
import functools

import jax
import jax.numpy as jnp
from jax.experimental import pallas as pl
from jax.experimental.pallas import tpu as pltpu

LANE = 128
SUB_ROWS = 512            # rows per in-kernel streaming chunk (multiple of 32)
MAX_BLOCK_ROWS = 8192     # 8192x128 f32 = 4 MiB/input block; x2 inputs x2 buffers = 16 MiB
VMEM_LIMIT_BYTES = 32 << 20


def _round_up(x, m):
    return ((x + m - 1) // m) * m


def _sublane_multiple(dtype):
    # Min second-to-last tile dim: 8 (32-bit), 16 (16-bit), 32 (8-bit).
    return max(8, 32 // max(1, jnp.dtype(dtype).itemsize))


def _num_tensorcores():
    # Split the grid over TensorCores only on 2-TC chips (v7x). v5e/v6e -> 1.
    try:
        kind = jax.devices()[0].device_kind.lower()
        if "v7" in kind:
            return 2
    except Exception:
        pass
    return 1


def _masked_mse_kernel(p_ref, t_ref, sum_ref, cnt_ref, *,
                       block_rows, sub_rows, m_rows, blocks_per_split,
                       needs_edge_mask):
    s = pl.program_id(0)   # TensorCore split (parallel axis)
    i = pl.program_id(1)   # reduction over row-blocks of this split

    @pl.when(i == 0)
    def _init():
        sum_ref[...] = jnp.zeros_like(sum_ref)
        cnt_ref[...] = jnp.zeros_like(cnt_ref)

    n_sub = block_rows // sub_rows
    blk = s * blocks_per_split + i   # logical (unclamped) block index

    def accum(t, p, extra_mask):
        t = t.astype(jnp.float32)
        p = p.astype(jnp.float32)
        mask = jnp.logical_not(jnp.isnan(t))          # known_mask
        if extra_mask is not None:
            mask = jnp.logical_and(mask, extra_mask)
        # nan_to_num is redundant: where() already zeroes masked positions
        # (select does not propagate NaN from the unselected branch).
        diff = jnp.where(mask, t - p, 0.0)
        # Fold (sub_rows,128) -> (8,128) with pure VPU adds into the resident
        # output accumulators.
        sum_ref[...] += jnp.sum((diff * diff).reshape(-1, 8, LANE), axis=0)
        cnt_ref[...] += jnp.sum(mask.astype(jnp.float32).reshape(-1, 8, LANE),
                                axis=0)

    def sweep(make_extra_mask):
        # Stream the block in sub_rows-sized chunks so intermediates never
        # exceed ~vreg-file scale (bounds live ranges; no VMEM spill).
        if n_sub == 1:
            extra = None if make_extra_mask is None else make_extra_mask(0)
            accum(t_ref[...], p_ref[...], extra)
        else:
            @pl.loop(0, n_sub)
            def _(c):
                off = pl.multiple_of(c * sub_rows, sub_rows)
                extra = None if make_extra_mask is None else make_extra_mask(off)
                accum(t_ref[pl.ds(off, sub_rows), :],
                      p_ref[pl.ds(off, sub_rows), :],
                      extra)

    if not needs_edge_mask:
        # Whole array tiles exactly: mask-free hot path on every step.
        sweep(None)
    else:
        # Only blocks that extend past the true end of the data (partial tail
        # block or a clamped duplicate of the second split) need the row mask.
        is_edge = (blk + 1) * block_rows > m_rows

        @pl.when(jnp.logical_not(is_edge))
        def _interior():
            sweep(None)

        @pl.when(is_edge)
        def _edge():
            block_start = blk * block_rows

            def row_mask(chunk_off):
                row_ids = (block_start + chunk_off
                           + jax.lax.broadcasted_iota(jnp.int32,
                                                      (sub_rows, LANE), 0))
                return row_ids < m_rows

            sweep(row_mask)


def masked_mse_loss(pred, target):
    """MaskedLoss(nn.MSELoss)(pred, target) -> scalar float32."""
    p = pred.reshape(-1)
    t = target.reshape(-1)
    n = p.shape[0]

    # 128-aligned prefix goes through the kernel; the <128-element remainder is
    # reduced with a tiny XLA epilogue (no full-array pad copy).
    n_main = (n // LANE) * LANE
    rem = n - n_main
    if rem:
        p_tail = p[n_main:].astype(jnp.float32)
        t_tail = t[n_main:].astype(jnp.float32)
        tail_mask = jnp.logical_not(jnp.isnan(t_tail))
        tail_diff = jnp.where(tail_mask, t_tail - p_tail, 0.0)
        tail_sum = jnp.sum(tail_diff * tail_diff)
        tail_cnt = jnp.sum(tail_mask.astype(jnp.float32))
        p_main, t_main = p[:n_main], t[:n_main]
    else:
        tail_sum = jnp.asarray(0.0, jnp.float32)
        tail_cnt = jnp.asarray(0.0, jnp.float32)
        p_main, t_main = p, t

    if n_main == 0:
        # Fewer than 128 elements total: pure XLA path.
        return tail_sum / tail_cnt

    m_rows = n_main // LANE
    p2 = p_main.reshape(m_rows, LANE)
    t2 = t_main.reshape(m_rows, LANE)

    # Block rows: dtype-native sublane multiple for small inputs, 512-row
    # streaming chunks inside large blocks for big inputs.
    sub_mult = max(_sublane_multiple(pred.dtype), _sublane_multiple(target.dtype))
    if m_rows >= SUB_ROWS:
        block_rows = min(MAX_BLOCK_ROWS, _round_up(m_rows, SUB_ROWS))
        sub_rows = SUB_ROWS
    else:
        block_rows = _round_up(m_rows, sub_mult)
        sub_rows = block_rows

    blocks_total = pl.cdiv(m_rows, block_rows)
    num_splits = max(1, min(_num_tensorcores(), blocks_total))
    blocks_per_split = pl.cdiv(blocks_total, num_splits)
    has_duplicates = blocks_per_split * num_splits != blocks_total
    needs_edge_mask = (m_rows % block_rows != 0) or has_duplicates

    def in_map(s, i):
        blk = s * blocks_per_split + i
        if has_duplicates:
            # Clamp logically-out-of-range blocks; the kernel's row mask zeroes
            # their contribution entirely.
            blk = jnp.minimum(blk, blocks_total - 1)
        return (blk, 0)

    out_map = lambda s, i: (s, 0)   # per-split resident accumulator block

    kernel = functools.partial(
        _masked_mse_kernel,
        block_rows=block_rows,
        sub_rows=sub_rows,
        m_rows=m_rows,
        blocks_per_split=blocks_per_split,
        needs_edge_mask=needs_edge_mask,
    )

    bytes_accessed = (n_main * (jnp.dtype(pred.dtype).itemsize
                                + jnp.dtype(target.dtype).itemsize)
                      + 2 * num_splits * 8 * LANE * 4)
    cost = pl.CostEstimate(flops=6 * n_main, transcendentals=0,
                           bytes_accessed=bytes_accessed)

    sums, cnts = pl.pallas_call(
        kernel,
        out_shape=(
            jax.ShapeDtypeStruct((num_splits * 8, LANE), jnp.float32),
            jax.ShapeDtypeStruct((num_splits * 8, LANE), jnp.float32),
        ),
        grid_spec=pltpu.PrefetchScalarGridSpec(
            num_scalar_prefetch=0,
            grid=(num_splits, blocks_per_split),
            in_specs=[
                pl.BlockSpec((block_rows, LANE), in_map),
                pl.BlockSpec((block_rows, LANE), in_map),
            ],
            out_specs=[
                pl.BlockSpec((8, LANE), out_map),
                pl.BlockSpec((8, LANE), out_map),
            ],
        ),
        compiler_params=pltpu.CompilerParams(
            dimension_semantics=("parallel", "arbitrary"),
            vmem_limit_bytes=VMEM_LIMIT_BYTES,
        ),
        cost_estimate=cost,
    )(p2, t2)

    # O(1)-size final combine in XLA. NaN if count == 0 (all-NaN target),
    # matching nn.MSELoss on an empty selection.
    return (jnp.sum(sums) + tail_sum) / (jnp.sum(cnts) + tail_cnt)


def _reference_masked_mse(pred, target):
    mask = jnp.logical_not(jnp.isnan(target))
    t = jnp.nan_to_num(target)
    diff = jnp.where(mask, t - pred, 0.0)
    return jnp.sum(diff * diff) / jnp.sum(mask.astype(jnp.float32))


if __name__ == "__main__":
    key = jax.random.PRNGKey(0)
    k_pred, k_tgt, k_nan, k_pred2, k_tgt2, k_nan2 = jax.random.split(key, 6)

    # Test 1: 128-aligned flat length (typical image shape).
    B, C, H, W = 2, 4, 16, 16
    pred = jax.random.normal(k_pred, (B, C, H, W), dtype=jnp.float32)
    target = jax.random.normal(k_tgt, (B, C, H, W), dtype=jnp.float32)
    nan_mask = jax.random.uniform(k_nan, (B, C, H, W)) < 0.3
    target = jnp.where(nan_mask, jnp.nan, target)

    loss = masked_mse_loss(pred, target)
    jax.block_until_ready(loss)
    ref = _reference_masked_mse(pred, target)
    assert jnp.allclose(loss, ref, rtol=1e-5, atol=1e-6), (loss, ref)

    # Test 2: non-128-multiple flat length (exercises edge-mask path + XLA tail).
    B2, C2, H2, W2 = 2, 4, 17, 17
    pred2 = jax.random.normal(k_pred2, (B2, C2, H2, W2), dtype=jnp.float32)
    target2 = jax.random.normal(k_tgt2, (B2, C2, H2, W2), dtype=jnp.float32)
    nan_mask2 = jax.random.uniform(k_nan2, (B2, C2, H2, W2)) < 0.3
    target2 = jnp.where(nan_mask2, jnp.nan, target2)

    loss2 = masked_mse_loss(pred2, target2)
    jax.block_until_ready(loss2)
    ref2 = _reference_masked_mse(pred2, target2)
    assert jnp.allclose(loss2, ref2, rtol=1e-5, atol=1e-6), (loss2, ref2)

    print("KERNEL_OK")
</pallas_src>

<mosaic_0001>
module attributes {stable_mosaic.version = 11 : i64} {
  func.func @_masked_mse_kernel(%arg0: i32, %arg1: i32, %arg2: memref<16x128xf32, #tpu.memory_space<vmem>>, %arg3: memref<16x128xf32, #tpu.memory_space<vmem>>, %arg4: memref<8x128xf32, #tpu.memory_space<vmem>>, %arg5: memref<8x128xf32, #tpu.memory_space<vmem>>) attributes {dimension_semantics = [#tpu.dimension_semantics<parallel>, #tpu.dimension_semantics<arbitrary>], iteration_bounds = array<i64: 1, 1>, scalar_prefetch = 0 : i64, scratch_operands = 0 : i64, tpu.core_type = #tpu.core_type<tc>, window_params = [{transform_indices = @transform_0, window_bounds = array<i64: 16, 128>}, {transform_indices = @transform_1, window_bounds = array<i64: 16, 128>}, {transform_indices = @transform_2, window_bounds = array<i64: 8, 128>}, {transform_indices = @transform_3, window_bounds = array<i64: 8, 128>}]} {
    %c0_i32 = arith.constant 0 : i32
    %0 = arith.cmpi eq, %arg1, %c0_i32 : i32
    %1 = arith.extui %0 : i1 to i32
    %c0_i32_0 = arith.constant 0 : i32
    %2 = arith.cmpi ne, %1, %c0_i32_0 : i32
    scf.if %2 {
      %cst_15 = arith.constant 0.000000e+00 : f32
      %23 = vector.broadcast %cst_15 : f32 to vector<8x128xf32>
      %c0_16 = arith.constant 0 : index
      %c0_17 = arith.constant 0 : index
      %24 = vector.load %arg4[%c0_16, %c0_17] : memref<8x128xf32, #tpu.memory_space<vmem>>, vector<8x128xf32>
      tpu.vector_store %arg4[%c0_16, %c0_17], %23 {strides = array<i32>} : memref<8x128xf32, #tpu.memory_space<vmem>>, vector<8x128xf32>,
      %cst_18 = arith.constant 0.000000e+00 : f32
      %25 = vector.broadcast %cst_18 : f32 to vector<8x128xf32>
      %c0_19 = arith.constant 0 : index
      %c0_20 = arith.constant 0 : index
      %26 = vector.load %arg5[%c0_19, %c0_20] : memref<8x128xf32, #tpu.memory_space<vmem>>, vector<8x128xf32>
      tpu.vector_store %arg5[%c0_19, %c0_20], %25 {strides = array<i32>} : memref<8x128xf32, #tpu.memory_space<vmem>>, vector<8x128xf32>,
    } else {
    }
    %c0 = arith.constant 0 : index
    %c0_1 = arith.constant 0 : index
    %3 = vector.load %arg3[%c0, %c0_1] : memref<16x128xf32, #tpu.memory_space<vmem>>, vector<16x128xf32>
    %c0_2 = arith.constant 0 : index
    %c0_3 = arith.constant 0 : index
    %4 = vector.load %arg2[%c0_2, %c0_3] : memref<16x128xf32, #tpu.memory_space<vmem>>, vector<16x128xf32>
    %5 = arith.cmpf one, %3, %3 : vector<16x128xf32>
    %cst = arith.constant dense<true> : vector<16x128xi1>
    %6 = arith.xori %5, %cst : vector<16x128xi1>
    %7 = arith.subf %3, %4 : vector<16x128xf32>
    %cst_4 = arith.constant 0.000000e+00 : f32
    %8 = vector.broadcast %cst_4 : f32 to vector<16x128xf32>
    %9 = arith.select %6, %7, %8 : vector<16x128xi1>, vector<16x128xf32>
    %c0_5 = arith.constant 0 : index
    %c0_6 = arith.constant 0 : index
    %10 = vector.load %arg4[%c0_5, %c0_6] : memref<8x128xf32, #tpu.memory_space<vmem>>, vector<8x128xf32>
    %11 = arith.mulf %9, %9 : vector<16x128xf32>
    %12 = vector.shape_cast %11 : vector<16x128xf32> to vector<2x8x128xf32>
    %cst_7 = arith.constant dense<0.000000e+00> : vector<8x128xf32>
    %13 = vector.multi_reduction <add>, %12, %cst_7 [0] : vector<2x8x128xf32> to vector<8x128xf32>
    %14 = arith.addf %10, %13 : vector<8x128xf32>
    %c0_8 = arith.constant 0 : index
    %c0_9 = arith.constant 0 : index
    %15 = vector.load %arg4[%c0_8, %c0_9] : memref<8x128xf32, #tpu.memory_space<vmem>>, vector<8x128xf32>
    tpu.vector_store %arg4[%c0_8, %c0_9], %14 {strides = array<i32>} : memref<8x128xf32, #tpu.memory_space<vmem>>, vector<8x128xf32>,
    %c0_10 = arith.constant 0 : index
    %c0_11 = arith.constant 0 : index
    %16 = vector.load %arg5[%c0_10, %c0_11] : memref<8x128xf32, #tpu.memory_space<vmem>>, vector<8x128xf32>
    %17 = arith.extui %6 : vector<16x128xi1> to vector<16x128xi32>
    %18 = arith.sitofp %17 : vector<16x128xi32> to vector<16x128xf32>
    %19 = vector.shape_cast %18 : vector<16x128xf32> to vector<2x8x128xf32>
    %cst_12 = arith.constant dense<0.000000e+00> : vector<8x128xf32>
    %20 = vector.multi_reduction <add>, %19, %cst_12 [0] : vector<2x8x128xf32> to vector<8x128xf32>
    %21 = arith.addf %16, %20 : vector<8x128xf32>
    %c0_13 = arith.constant 0 : index
    %c0_14 = arith.constant 0 : index
    %22 = vector.load %arg5[%c0_13, %c0_14] : memref<8x128xf32, #tpu.memory_space<vmem>>, vector<8x128xf32>
    tpu.vector_store %arg5[%c0_13, %c0_14], %21 {strides = array<i32>} : memref<8x128xf32, #tpu.memory_space<vmem>>, vector<8x128xf32>,
    return
  }
  func.func @transform_0(%arg0: i32, %arg1: i32) -> (i32, i32) {
    %c1_i32 = arith.constant 1 : i32
    %0 = arith.muli %arg0, %c1_i32 : i32
    %1 = arith.addi %0, %arg1 : i32
    %c0_i32 = arith.constant 0 : i32
    %c0_i32_0 = arith.constant 0 : i32
    return %1, %c0_i32 : i32, i32
  }
  func.func @transform_1(%arg0: i32, %arg1: i32) -> (i32, i32) {
    %c1_i32 = arith.constant 1 : i32
    %0 = arith.muli %arg0, %c1_i32 : i32
    %1 = arith.addi %0, %arg1 : i32
    %c0_i32 = arith.constant 0 : i32
    %c0_i32_0 = arith.constant 0 : i32
    return %1, %c0_i32 : i32, i32
  }
  func.func @transform_2(%arg0: i32, %arg1: i32) -> (i32, i32) {
    %c0_i32 = arith.constant 0 : i32
    %c0_i32_0 = arith.constant 0 : i32
    return %arg0, %c0_i32 : i32, i32
  }
  func.func @transform_3(%arg0: i32, %arg1: i32) -> (i32, i32) {
    %c0_i32 = arith.constant 0 : i32
    %c0_i32_0 = arith.constant 0 : i32
    return %arg0, %c0_i32 : i32, i32
  }
}

</mosaic_0001>

<llo_original>
// kernel: tpu_custom_call.1
$region0: #{tpu_custom_call.1}
  #allocation0 [shape = 'u32[]', space=smem, size = 0x4, offset = 0x4, fixed_abs, tag = 'smem constant byte address 0x4 - core index']
  #allocation1 [shape = 'u32[144,128]{1,0:T(1,128)}', space=vmem, size = 0x12000, scoped, tag = 'internal scratch']
  %s0 = inlined_call_operand.hbm [shape: f32[16,128], index: 0, kind: input, shape index: {}]
  %s1 = inlined_call_operand.hbm [shape: f32[16,128], index: 1, kind: input, shape index: {}]
  %s2 = inlined_call_operand.hbm [shape: f32[8,128], index: 2, kind: output, shape index: {0}]
  %s3 = inlined_call_operand.hbm [shape: f32[8,128], index: 3, kind: output, shape index: {1}]
  %4 = xla_tuple %s2, %s3
  %s5 = sld [smem:[#allocation0]]
  $region38: #{tpu_custom_call.1} parent=0
    _
  %s7 = ssub.s32 1, %s5
  %s8 = scalar_select 0, %s7, %s5
  $region1: #{tpu_custom_call.1} parent=0
    #allocation2 [shape = 'u8[8192]{0}', space=vmem, size = 0x2000, scoped, tag = 'input window, operand 0, single buffered']
    #allocation3 [shape = 's32[1]{0}', space=sflag, size = 0x4, scoped, tag = 'scoped memory for tpu_custom_call.1']
    #allocation4 [shape = 's32[1]{0}', space=sflag, size = 0x4, scoped, tag = 'scoped memory for tpu_custom_call.1']
    #allocation5 [shape = 'u8[8192]{0}', space=vmem, size = 0x2000, scoped, tag = 'input window, operand 1, single buffered']
    #allocation6 [shape = 's32[1]{0}', space=sflag, size = 0x4, scoped, tag = 'scoped memory for tpu_custom_call.1']
    #allocation7 [shape = 'u8[4096]{0}', space=vmem, size = 0x1000, scoped, tag = 'output window, operand 0, single buffered']
    #allocation8 [shape = 'u8[4096]{0}', space=vmem, size = 0x1000, scoped, tag = 'output window, operand 1, single buffered']
    #allocation9 [shape = 's32[1]{0}', space=sflag, size = 0x4, scoped, tag = 'scoped memory for tpu_custom_call.1']
    %9 = vsyncpa [#allocation3], 0
    %10 = vsyncpa [#allocation6], 0
    %11 = vsyncpa [#allocation4], 0
    %12 = vsyncpa [#allocation9], 0
    // Predicated region
    $region2: #{tpu_custom_call.1} parent=1 // pred_check
      _
    $region3: #{tpu_custom_call.1} parent=1 // pred_check_branch
      %14 = sbr.rel (0) target = $region5
    $region4: #{tpu_custom_call.1} parent=1 // pred_region
      %s15 = sadd.s32 0, 0
      %s16 = smul.u32 2, %s15
      %s18 = ssub.s32 256, 256
      %19 = vsyncadd [#allocation3], %s18
      %s20 = smul.addr %s16, 128
      %s21 = scalar_lea.hbm %s0, %s20
      %s22 = sshll.u32 [#allocation2], 4
      %s23 = int_to_ptr.vmem [resolvable:$true] %s22
      %28 = dma.hbm_to_vmem [thread:$0]  %s21, 256, %s23, [#allocation3], 128, 128, 8
    $region5: #{tpu_custom_call.1} parent=1 // pred_fallthru
      _
    // Predicated region
    $region6: #{tpu_custom_call.1} parent=1 // pred_check
      _
    $region7: #{tpu_custom_call.1} parent=1 // pred_check_branch
      %30 = sbr.rel (0) target = $region9
    $region8: #{tpu_custom_call.1} parent=1 // pred_region
      %s31 = sadd.s32 0, 0
      %s32 = smul.u32 2, %s31
      %s34 = ssub.s32 256, 256
      %35 = vsyncadd [#allocation6], %s34
      %s36 = smul.addr %s32, 128
      %s37 = scalar_lea.hbm %s1, %s36
      %s38 = sshll.u32 [#allocation5], 4
      %s39 = int_to_ptr.vmem [resolvable:$true] %s38
      %44 = dma.hbm_to_vmem [thread:$0]  %s37, 256, %s39, [#allocation6], 128, 128, 8
    $region9: #{tpu_custom_call.1} parent=1 // pred_fallthru
      _
    // Predicated region
    $region10: #{tpu_custom_call.1} parent=1 // pred_check
      _
    $region11: #{tpu_custom_call.1} parent=1 // pred_check_branch
      %46 = sbr.rel (0) target = $region13
    $region12: #{tpu_custom_call.1} parent=1 // pred_region
      %47 = dma.done [#allocation3], 256
    $region13: #{tpu_custom_call.1} parent=1 // pred_fallthru
      _
    // Predicated region
    $region14: #{tpu_custom_call.1} parent=1 // pred_check
      _
    $region15: #{tpu_custom_call.1} parent=1 // pred_check_branch
      %49 = sbr.rel (0) target = $region17
    $region16: #{tpu_custom_call.1} parent=1 // pred_region
      %50 = dma.done [#allocation6], 256
    $region17: #{tpu_custom_call.1} parent=1 // pred_fallthru
      _
    %s51 = sadd.s32 0, 0
    %s52 = smul.u32 2, %s51
    %s53 = sadd.s32 0, 0
    %s54 = smul.u32 2, %s53
    %p55 = scmp.eq.s32.totalorder 0, 0
    // Predicated region
    $region18: #{tpu_custom_call.1} parent=1 // pred_check
      %p56 = pneg %p55
    $region19: #{tpu_custom_call.1} parent=1 // pred_check_branch
      %58 = sbr.rel (%p56) target = $region21
    $region20: #{tpu_custom_call.1} parent=1 // pred_region
      %59 = vst [vmem:[#allocation7] sm:$0xff] 0.0
      %60 = vst [vmem:[#allocation8] sm:$0xff] 0.0
    $region21: #{tpu_custom_call.1} parent=1 // pred_fallthru
      _
    %v61 = vld [vmem:[#allocation5] sm:$0xff]
    %v62 = vld [vmem:[#allocation5 + $0x8] sm:$0xff]
    %v63 = vld [vmem:[#allocation2] sm:$0xff]
    %v64 = vld [vmem:[#allocation2 + $0x8] sm:$0xff]
    %vm65 = vcmp.ne.f32.partialorder %v61, %v61
    %vm66 = vcmp.ne.f32.partialorder %v62, %v62
    %vm67 = vmxor %vm65, 1
    %vm68 = vmxor %vm66, 1
    %v69 = vsub.f32 %v61, %v63
    %v70 = vsub.f32 %v62, %v64
    %v71 = vsel %vm67, %v69, 0.0
    %v72 = vsel %vm68, %v70, 0.0
    %v73 = vld [vmem:[#allocation7] sm:$0xff]
    %v74 = vmul.f32 %v71, %v71
    %v75 = vmul.f32 %v72, %v72
    %v76 = vadd.f32 %v74, %v75
    %v77 = vadd.f32 %v73, %v76
    %78 = vst [vmem:[#allocation7] sm:$0xff] %v77
    %v79 = vld [vmem:[#allocation8] sm:$0xff]
    %v80 = vsel %vm67, 1, 0
    %v81 = vsel %vm68, 1, 0
    %v82 = vcvt.s32.f32 %v80
    %v83 = vcvt.s32.f32 %v81
    %v84 = vadd.f32 %v82, %v83
    %v85 = vadd.f32 %v79, %v84
    %86 = vst [vmem:[#allocation8] sm:$0xff] %v85
    // Predicated region
    $region22: #{tpu_custom_call.1} parent=1 // pred_check
      _
    $region23: #{tpu_custom_call.1} parent=1 // pred_check_branch
      %88 = sbr.rel (0) target = $region25
    $region24: #{tpu_custom_call.1} parent=1 // pred_region
      %s90 = ssub.s32 128, 128
      %91 = vsyncadd [#allocation4], %s90
      %s93 = sshll.u32 [#allocation7], 4
      %s94 = int_to_ptr.vmem [resolvable:$true] %s93
      %96 = dma.vmem_to_hbm [thread:$0]  %s94, 128, %s2, [#allocation4]
    $region25: #{tpu_custom_call.1} parent=1 // pred_fallthru
      _
    // Predicated region
    $region26: #{tpu_custom_call.1} parent=1 // pred_check
      _
    $region27: #{tpu_custom_call.1} parent=1 // pred_check_branch
      %98 = sbr.rel (0) target = $region29
    $region28: #{tpu_custom_call.1} parent=1 // pred_region
      %s100 = ssub.s32 128, 128
      %101 = vsyncadd [#allocation9], %s100
      %s103 = sshll.u32 [#allocation8], 4
      %s104 = int_to_ptr.vmem [resolvable:$true] %s103
      %106 = dma.vmem_to_hbm [thread:$0]  %s104, 128, %s3, [#allocation9]
    $region29: #{tpu_custom_call.1} parent=1 // pred_fallthru
      _
    // Predicated region
    $region30: #{tpu_custom_call.1} parent=1 // pred_check
      _
    $region31: #{tpu_custom_call.1} parent=1 // pred_check_branch
      %108 = sbr.rel (0) target = $region33
    $region32: #{tpu_custom_call.1} parent=1 // pred_region
      %109 = dma.done [#allocation4], 128
    $region33: #{tpu_custom_call.1} parent=1 // pred_fallthru
      _
    // Predicated region
    $region34: #{tpu_custom_call.1} parent=1 // pred_check
      _
    $region35: #{tpu_custom_call.1} parent=1 // pred_check_branch
      %111 = sbr.rel (0) target = $region37
    $region36: #{tpu_custom_call.1} parent=1 // pred_region
      %112 = dma.done [#allocation9], 128
    $region37: #{tpu_custom_call.1} parent=1 // pred_fallthru
      _
    %113 = vsyncpa [#allocation3], 1
    %114 = vsyncpa [#allocation6], 1
    %115 = vsyncpa [#allocation4], 1
    %116 = vsyncpa [#allocation9], 1

</llo_original>
